<compile_context>
chip_gen: v7x
topology: tpu7x:2x2x1
jax: 0.10.0
libtpu: 0.0.40
codegen_flags: <defaults>
</compile_context>

<pallas_src>
import functools
import math

import jax
import jax.numpy as jnp
from jax import lax
from jax.experimental import pallas as pl
from jax.experimental.pallas import tpu as pltpu


def _pick_tile(dim, target, align):
    """Largest multiple of `align` that divides `dim` and is <= target, else `dim`."""
    if dim <= target or dim % align:
        return dim
    t = (target // align) * align
    while t >= align:
        if dim % t == 0:
            return t
        t -= align
    return dim


# ---------------------------------------------------------------------------
# Linear (x @ W + b) kernel — tiled over M and N, K kept whole.
# ---------------------------------------------------------------------------
def linear_kernel(x_ref, w_ref, b_ref, o_ref):
    acc = jnp.dot(
        x_ref[...].astype(jnp.bfloat16),
        w_ref[...].astype(jnp.bfloat16),
        preferred_element_type=jnp.float32,
    )
    o_ref[...] = (acc + b_ref[...]).astype(o_ref.dtype)


def linear(x2d, w, b, *, tile_m=256, tile_n=512):
    M, K = x2d.shape
    N = w.shape[1]
    tm = _pick_tile(M, tile_m, 8)
    tn = _pick_tile(N, tile_n, 128)
    grid = (M // tm, N // tn)
    return pl.pallas_call(
        linear_kernel,
        out_shape=jax.ShapeDtypeStruct((M, N), x2d.dtype),
        grid=grid,
        in_specs=[
            pl.BlockSpec((tm, K), lambda i, j: (i, 0)),
            pl.BlockSpec((K, tn), lambda i, j: (0, j)),
            pl.BlockSpec((1, tn), lambda i, j: (0, j)),
        ],
        out_specs=pl.BlockSpec((tm, tn), lambda i, j: (i, j)),
        compiler_params=pltpu.CompilerParams(
            dimension_semantics=("parallel", "parallel")
        ),
    )(x2d, w, b.reshape(1, N))


# ---------------------------------------------------------------------------
# Fused multi-head causal attention straight from the (B, T, 3C) qkv tensor.
#   grid = (batch, query-tile); output written lane-dense as (B, T, C).
# ---------------------------------------------------------------------------
def attn_kernel(qkv_q_ref, qkv_kv_ref, o_ref, *, n_head, head_dim, q_tile):
    qi = pl.program_id(1)

    qblk = qkv_q_ref[0]          # (TQ, 3C) f32   — this program's query rows
    kvblk = qkv_kv_ref[0]        # (T,  3C) f32   — full-length keys/values
    TQ = qblk.shape[0]
    T = kvblk.shape[0]
    C = n_head * head_dim
    scale = 1.0 / math.sqrt(head_dim)

    # Causal mask for this query tile (global row index = qi*TQ + local row).
    row = lax.broadcasted_iota(jnp.int32, (TQ, T), 0) + qi * q_tile
    col = lax.broadcasted_iota(jnp.int32, (TQ, T), 1)
    causal = row >= col

    outs = []
    for h in range(n_head):                      # static loop over heads
        lo = h * head_dim
        hi = lo + head_dim
        # Fold 1/sqrt(D) into q (f32), then feed bf16 operands to the MXU.
        q = (qblk[:, lo:hi] * scale).astype(jnp.bfloat16)              # (TQ, D)
        k = kvblk[:, C + lo:C + hi].astype(jnp.bfloat16)               # (T,  D)
        v = kvblk[:, 2 * C + lo:2 * C + hi].astype(jnp.bfloat16)       # (T,  D)

        # QK^T without an explicit transpose: contract last dims of q and k.
        s = lax.dot_general(
            q, k, (((1,), (1,)), ((), ())),
            preferred_element_type=jnp.float32,
        )                                                              # (TQ, T) f32
        s = jnp.where(causal, s, -jnp.inf)

        # Numerically stable softmax — statistics in f32.
        m = jnp.max(s, axis=-1, keepdims=True)
        p = jnp.exp(s - m)
        l = jnp.sum(p, axis=-1, keepdims=True)

        acc = jnp.dot(p.astype(jnp.bfloat16), v,
                      preferred_element_type=jnp.float32)              # (TQ, D) f32
        outs.append(acc * pl.reciprocal(l, approx=True))

    # Single lane-dense store of the merged heads: (TQ, C).
    o_ref[0] = jnp.concatenate(outs, axis=-1).astype(o_ref.dtype)


def causal_attention_fused(qkv, n_head, *, q_tile=256):
    B, T, C3 = qkv.shape
    C = C3 // 3
    head_dim = C // n_head
    TQ = _pick_tile(T, q_tile, 8)
    grid = (B, T // TQ)

    kernel = functools.partial(
        attn_kernel, n_head=n_head, head_dim=head_dim, q_tile=TQ
    )
    return pl.pallas_call(
        kernel,
        out_shape=jax.ShapeDtypeStruct((B, T, C), qkv.dtype),
        grid=grid,
        in_specs=[
            pl.BlockSpec((1, TQ, C3), lambda b, qi: (b, qi, 0)),   # query rows
            pl.BlockSpec((1, T, C3), lambda b, qi: (b, 0, 0)),     # full K/V
        ],
        out_specs=pl.BlockSpec((1, TQ, C), lambda b, qi: (b, qi, 0)),
        compiler_params=pltpu.CompilerParams(
            dimension_semantics=("parallel", "parallel")
        ),
    )(qkv, qkv)


# ---------------------------------------------------------------------------
# Full module forward — no head split/merge transposes through HBM.
# ---------------------------------------------------------------------------
def causal_self_attention(x, w_attn, b_attn, w_proj, b_proj, n_head):
    B, T, C = x.shape
    qkv = linear(x.reshape(B * T, C), w_attn, b_attn).reshape(B, T, 3 * C)
    y = causal_attention_fused(qkv, n_head)
    y = linear(y.reshape(B * T, C), w_proj, b_proj).reshape(B, T, C)
    return y


# ---------------------------------------------------------------------------
# Pure-JAX f32 reference for a sanity check.
# ---------------------------------------------------------------------------
def reference(x, w_attn, b_attn, w_proj, b_proj, n_head):
    B, T, C = x.shape
    hd = C // n_head
    qkv = x @ w_attn + b_attn
    q, k, v = jnp.split(qkv, 3, axis=2)

    def to_heads(t):
        return t.reshape(B, T, n_head, hd).transpose(0, 2, 1, 3)

    q, k, v = to_heads(q), to_heads(k), to_heads(v)
    s = jnp.einsum("bhqd,bhkd->bhqk", q, k) / math.sqrt(hd)
    mask = jnp.tril(jnp.ones((T, T), dtype=bool))
    s = jnp.where(mask, s, -jnp.inf)
    p = jax.nn.softmax(s, axis=-1)
    y = jnp.einsum("bhqk,bhkd->bhqd", p, v)
    y = y.transpose(0, 2, 1, 3).reshape(B, T, C)
    return y @ w_proj + b_proj


if __name__ == "__main__":
    # Small config consistent with the module (n_embd % n_head == 0).
    B, T = 2, 128
    n_embd, n_head = 128, 4

    key = jax.random.PRNGKey(0)
    kx, k1, k2, k3, k4 = jax.random.split(key, 5)

    x = jax.random.normal(kx, (B, T, n_embd), dtype=jnp.float32)

    # Deterministic parameter init (stored pre-transposed: (in, out)).
    std = 0.02
    w_attn = std * jax.random.normal(k1, (n_embd, 3 * n_embd), dtype=jnp.float32)
    b_attn = std * jax.random.normal(k2, (3 * n_embd,), dtype=jnp.float32)
    w_proj = std * jax.random.normal(k3, (n_embd, n_embd), dtype=jnp.float32)
    b_proj = std * jax.random.normal(k4, (n_embd,), dtype=jnp.float32)

    y = causal_self_attention(x, w_attn, b_attn, w_proj, b_proj, n_head)
    y = jax.block_until_ready(y)

    y_ref = reference(x, w_attn, b_attn, w_proj, b_proj, n_head)
    # bf16 MXU operands + approx reciprocal => compare with a bf16-level tolerance.
    assert jnp.allclose(y, y_ref, atol=2e-2, rtol=2e-2), "mismatch vs reference"

    print("KERNEL_OK")
</pallas_src>

<mosaic_0001>
module attributes {stable_mosaic.version = 11 : i64} {
  func.func @linear_kernel(%arg0: i32, %arg1: i32, %arg2: memref<256x128xf32, #tpu.memory_space<vmem>>, %arg3: memref<128x384xf32, #tpu.memory_space<vmem>>, %arg4: memref<1x384xf32, #tpu.memory_space<vmem>>, %arg5: memref<256x384xf32, #tpu.memory_space<vmem>>) attributes {dimension_semantics = [#tpu.dimension_semantics<parallel>, #tpu.dimension_semantics<parallel>], iteration_bounds = array<i64: 1, 1>, scalar_prefetch = 0 : i64, scratch_operands = 0 : i64, tpu.core_type = #tpu.core_type<tc>, window_params = [{transform_indices = @transform_0, window_bounds = array<i64: 256, 128>}, {transform_indices = @transform_1, window_bounds = array<i64: 128, 384>}, {transform_indices = @transform_2, window_bounds = array<i64: 1, 384>}, {transform_indices = @transform_3, window_bounds = array<i64: 256, 384>}]} {
    %c0 = arith.constant 0 : index
    %c0_0 = arith.constant 0 : index
    %0 = vector.load %arg2[%c0, %c0_0] : memref<256x128xf32, #tpu.memory_space<vmem>>, vector<256x128xf32>
    %1 = arith.truncf %0 : vector<256x128xf32> to vector<256x128xbf16>
    %c0_1 = arith.constant 0 : index
    %c0_2 = arith.constant 0 : index
    %2 = vector.load %arg3[%c0_1, %c0_2] : memref<128x384xf32, #tpu.memory_space<vmem>>, vector<128x384xf32>
    %3 = arith.truncf %2 : vector<128x384xf32> to vector<128x384xbf16>
    %cst = arith.constant dense<0.000000e+00> : vector<256x384xf32>
    %4 = tpu.matmul %1, %3, %cst {dimension_numbers = #tpu.dot_dimension_numbers<[1], [0], [0], [1], [0, 0, 1, 1], [], []>} : vector<256x128xbf16>, vector<128x384xbf16>, vector<256x384xf32> -> vector<256x384xf32>
    %c0_3 = arith.constant 0 : index
    %c0_4 = arith.constant 0 : index
    %5 = vector.load %arg4[%c0_3, %c0_4] : memref<1x384xf32, #tpu.memory_space<vmem>>, vector<1x384xf32>
    %6 = vector.broadcast %5 : vector<1x384xf32> to vector<256x384xf32>
    %7 = arith.addf %4, %6 : vector<256x384xf32>
    %c0_5 = arith.constant 0 : index
    %c0_6 = arith.constant 0 : index
    %8 = vector.load %arg5[%c0_5, %c0_6] : memref<256x384xf32, #tpu.memory_space<vmem>>, vector<256x384xf32>
    tpu.vector_store %arg5[%c0_5, %c0_6], %7 {strides = array<i32>} : memref<256x384xf32, #tpu.memory_space<vmem>>, vector<256x384xf32>,
    return
  }
  func.func @transform_0(%arg0: i32, %arg1: i32) -> (i32, i32) {
    %c0_i32 = arith.constant 0 : i32
    %c0_i32_0 = arith.constant 0 : i32
    return %arg0, %c0_i32 : i32, i32
  }
  func.func @transform_1(%arg0: i32, %arg1: i32) -> (i32, i32) {
    %c0_i32 = arith.constant 0 : i32
    %c0_i32_0 = arith.constant 0 : i32
    return %c0_i32, %arg1 : i32, i32
  }
  func.func @transform_2(%arg0: i32, %arg1: i32) -> (i32, i32) {
    %c0_i32 = arith.constant 0 : i32
    %c0_i32_0 = arith.constant 0 : i32
    return %c0_i32, %arg1 : i32, i32
  }
  func.func @transform_3(%arg0: i32, %arg1: i32) -> (i32, i32) {
    %c0_i32 = arith.constant 0 : i32
    return %arg0, %arg1 : i32, i32
  }
}

</mosaic_0001>

<llo_original>
// kernel: tpu_custom_call.1
$region0: #{tpu_custom_call.1}
  #allocation0 [shape = 'u32[]', space=smem, size = 0x4, offset = 0x4, fixed_abs, tag = 'smem constant byte address 0x4 - core index']
  #allocation1 [shape = 'u32[144,128]{1,0:T(1,128)}', space=vmem, size = 0x12000, scoped, tag = 'internal scratch']
  %s0 = inlined_call_operand.hbm [shape: f32[256,128], index: 0, kind: input, shape index: {}]
  %s1 = inlined_call_operand.hbm [shape: f32[128,384], index: 1, kind: input, shape index: {}]
  %s2 = inlined_call_operand.vmem [shape: f32[1,384], index: 2, kind: input, shape index: {}]
  %s3 = inlined_call_operand.hbm [shape: f32[256,384], index: 3, kind: output, shape index: {}]
  %s4 = sld [smem:[#allocation0]]
  $region30: #{tpu_custom_call.1} parent=0
    _
  %s6 = ssub.s32 1, %s4
  %s7 = scalar_select 0, %s6, %s4
  $region1: #{tpu_custom_call.1} parent=0
    #allocation2 [shape = 'u8[131072]{0}', space=vmem, size = 0x20000, scoped, tag = 'input window, operand 0, single buffered']
    #allocation3 [shape = 's32[1]{0}', space=sflag, size = 0x4, scoped, tag = 'scoped memory for tpu_custom_call.1']
    #allocation4 [shape = 's32[1]{0}', space=sflag, size = 0x4, scoped, tag = 'scoped memory for tpu_custom_call.1']
    #allocation5 [shape = 'u8[196608]{0}', space=vmem, size = 0x30000, scoped, tag = 'input window, operand 1, single buffered']
    #allocation6 [shape = 's32[1]{0}', space=sflag, size = 0x4, scoped, tag = 'scoped memory for tpu_custom_call.1']
    #allocation7 [shape = 'u8[393216]{0}', space=vmem, size = 0x60000, scoped, tag = 'output window, operand 0, single buffered']
    %8 = vsyncpa [#allocation3], 0
    %9 = vsyncpa [#allocation6], 0
    %10 = vsyncpa [#allocation4], 0
    // Predicated region
    $region2: #{tpu_custom_call.1} parent=1 // pred_check
      _
    $region3: #{tpu_custom_call.1} parent=1 // pred_check_branch
      %12 = sbr.rel (0) target = $region5
    $region4: #{tpu_custom_call.1} parent=1 // pred_region
      %s14 = ssub.s32 4096, 4096
      %15 = vsyncadd [#allocation3], %s14
      %s16 = sshll.u32 [#allocation2], 4
      %s17 = int_to_ptr.vmem [resolvable:$true] %s16
      %22 = dma.hbm_to_vmem [thread:$0]  %s0, 4096, %s17, [#allocation3], 128, 128, 8
    $region5: #{tpu_custom_call.1} parent=1 // pred_fallthru
      _
    // Predicated region
    $region6: #{tpu_custom_call.1} parent=1 // pred_check
      _
    $region7: #{tpu_custom_call.1} parent=1 // pred_check_branch
      %24 = sbr.rel (0) target = $region9
    $region8: #{tpu_custom_call.1} parent=1 // pred_region
      %s26 = ssub.s32 6144, 6144
      %27 = vsyncadd [#allocation6], %s26
      %s28 = sshll.u32 [#allocation5], 4
      %s29 = int_to_ptr.vmem [resolvable:$true] %s28
      %34 = dma.hbm_to_vmem [thread:$0]  %s1, 6144, %s29, [#allocation6], 384, 384, 24
    $region9: #{tpu_custom_call.1} parent=1 // pred_fallthru
      _
    // Predicated region
    $region10: #{tpu_custom_call.1} parent=1 // pred_check
      _
    $region11: #{tpu_custom_call.1} parent=1 // pred_check_branch
      %36 = sbr.rel (0) target = $region13
    $region12: #{tpu_custom_call.1} parent=1 // pred_region
      _
    $region13: #{tpu_custom_call.1} parent=1 // pred_fallthru
      _
    // Predicated region
    $region14: #{tpu_custom_call.1} parent=1 // pred_check
      _
    $region15: #{tpu_custom_call.1} parent=1 // pred_check_branch
      %38 = sbr.rel (0) target = $region17
    $region16: #{tpu_custom_call.1} parent=1 // pred_region
      %39 = dma.done [#allocation3], 4096
    $region17: #{tpu_custom_call.1} parent=1 // pred_fallthru
      _
    // Predicated region
    $region18: #{tpu_custom_call.1} parent=1 // pred_check
      _
    $region19: #{tpu_custom_call.1} parent=1 // pred_check_branch
      %41 = sbr.rel (0) target = $region21
    $region20: #{tpu_custom_call.1} parent=1 // pred_region
      %42 = dma.done [#allocation6], 6144
    $region21: #{tpu_custom_call.1} parent=1 // pred_fallthru
      _
    %v44 = vld [vmem:[#allocation2] sm:$0xff]
    %v45 = vld [vmem:[#allocation2 + $0x8] sm:$0xff]
    %v46 = vld [vmem:[#allocation2 + $0x10] sm:$0xff]
    %v47 = vld [vmem:[#allocation2 + $0x18] sm:$0xff]
    %v48 = vld [vmem:[#allocation2 + $0x20] sm:$0xff]
    %v49 = vld [vmem:[#allocation2 + $0x28] sm:$0xff]
    %v50 = vld [vmem:[#allocation2 + $0x30] sm:$0xff]
    %v51 = vld [vmem:[#allocation2 + $0x38] sm:$0xff]
    %v52 = vld [vmem:[#allocation2 + $0x40] sm:$0xff]
    %v53 = vld [vmem:[#allocation2 + $0x48] sm:$0xff]
    %v54 = vld [vmem:[#allocation2 + $0x50] sm:$0xff]
    %v55 = vld [vmem:[#allocation2 + $0x58] sm:$0xff]
    %v56 = vld [vmem:[#allocation2 + $0x60] sm:$0xff]
    %v57 = vld [vmem:[#allocation2 + $0x68] sm:$0xff]
    %v58 = vld [vmem:[#allocation2 + $0x70] sm:$0xff]
    %v59 = vld [vmem:[#allocation2 + $0x78] sm:$0xff]
    %v60 = vld [vmem:[#allocation2 + $0x80] sm:$0xff]
    %v61 = vld [vmem:[#allocation2 + $0x88] sm:$0xff]
    %v62 = vld [vmem:[#allocation2 + $0x90] sm:$0xff]
    %v63 = vld [vmem:[#allocation2 + $0x98] sm:$0xff]
    %v64 = vld [vmem:[#allocation2 + $0xa0] sm:$0xff]
    %v65 = vld [vmem:[#allocation2 + $0xa8] sm:$0xff]
    %v66 = vld [vmem:[#allocation2 + $0xb0] sm:$0xff]
    %v67 = vld [vmem:[#allocation2 + $0xb8] sm:$0xff]
    %v68 = vld [vmem:[#allocation2 + $0xc0] sm:$0xff]
    %v69 = vld [vmem:[#allocation2 + $0xc8] sm:$0xff]
    %v70 = vld [vmem:[#allocation2 + $0xd0] sm:$0xff]
    %v71 = vld [vmem:[#allocation2 + $0xd8] sm:$0xff]
    %v72 = vld [vmem:[#allocation2 + $0xe0] sm:$0xff]
    %v73 = vld [vmem:[#allocation2 + $0xe8] sm:$0xff]
    %v74 = vld [vmem:[#allocation2 + $0xf0] sm:$0xff]
    %v75 = vld [vmem:[#allocation2 + $0xf8] sm:$0xff]
    %v76 = vpack.c.bf16 %v45, %v44
    %v77 = vpack.c.bf16 %v47, %v46
    %v78 = vpack.c.bf16 %v49, %v48
    %v79 = vpack.c.bf16 %v51, %v50
    %v80 = vpack.c.bf16 %v53, %v52
    %v81 = vpack.c.bf16 %v55, %v54
    %v82 = vpack.c.bf16 %v57, %v56
    %v83 = vpack.c.bf16 %v59, %v58
    %v84 = vpack.c.bf16 %v61, %v60
    %v85 = vpack.c.bf16 %v63, %v62
    %v86 = vpack.c.bf16 %v65, %v64
    %v87 = vpack.c.bf16 %v67, %v66
    %v88 = vpack.c.bf16 %v69, %v68
    %v89 = vpack.c.bf16 %v71, %v70
    %v90 = vpack.c.bf16 %v73, %v72
    %v91 = vpack.c.bf16 %v75, %v74
    %v92 = vld [vmem:[#allocation5] sm:$0xff]
    %v93 = vld [vmem:[#allocation5 + $0x8] sm:$0xff]
    %v94 = vld [vmem:[#allocation5 + $0x10] sm:$0xff]
    %v95 = vld [vmem:[#allocation5 + $0x18] sm:$0xff]
    %v96 = vld [vmem:[#allocation5 + $0x20] sm:$0xff]
    %v97 = vld [vmem:[#allocation5 + $0x28] sm:$0xff]
    %v98 = vld [vmem:[#allocation5 + $0x30] sm:$0xff]
    %v99 = vld [vmem:[#allocation5 + $0x38] sm:$0xff]
    %v100 = vld [vmem:[#allocation5 + $0x40] sm:$0xff]
    %v101 = vld [vmem:[#allocation5 + $0x48] sm:$0xff]
    %v102 = vld [vmem:[#allocation5 + $0x50] sm:$0xff]
    %v103 = vld [vmem:[#allocation5 + $0x58] sm:$0xff]
    %v104 = vld [vmem:[#allocation5 + $0x60] sm:$0xff]
    %v105 = vld [vmem:[#allocation5 + $0x68] sm:$0xff]
    %v106 = vld [vmem:[#allocation5 + $0x70] sm:$0xff]
    %v107 = vld [vmem:[#allocation5 + $0x78] sm:$0xff]
    %v108 = vld [vmem:[#allocation5 + $0x80] sm:$0xff]
    %v109 = vld [vmem:[#allocation5 + $0x88] sm:$0xff]
    %v110 = vld [vmem:[#allocation5 + $0x90] sm:$0xff]
    %v111 = vld [vmem:[#allocation5 + $0x98] sm:$0xff]
    %v112 = vld [vmem:[#allocation5 + $0xa0] sm:$0xff]
    %v113 = vld [vmem:[#allocation5 + $0xa8] sm:$0xff]
    %v114 = vld [vmem:[#allocation5 + $0xb0] sm:$0xff]
    %v115 = vld [vmem:[#allocation5 + $0xb8] sm:$0xff]
    %v116 = vld [vmem:[#allocation5 + $0xc0] sm:$0xff]
    %v117 = vld [vmem:[#allocation5 + $0xc8] sm:$0xff]
    %v118 = vld [vmem:[#allocation5 + $0xd0] sm:$0xff]
    %v119 = vld [vmem:[#allocation5 + $0xd8] sm:$0xff]
    %v120 = vld [vmem:[#allocation5 + $0xe0] sm:$0xff]
    %v121 = vld [vmem:[#allocation5 + $0xe8] sm:$0xff]
    %v122 = vld [vmem:[#allocation5 + $0xf0] sm:$0xff]
    %v123 = vld [vmem:[#allocation5 + $0xf8] sm:$0xff]
    %v124 = vld [vmem:[#allocation5 + $0x100] sm:$0xff]
    %v125 = vld [vmem:[#allocation5 + $0x108] sm:$0xff]
    %v126 = vld [vmem:[#allocation5 + $0x110] sm:$0xff]
    %v127 = vld [vmem:[#allocation5 + $0x118] sm:$0xff]
    %v128 = vld [vmem:[#allocation5 + $0x120] sm:$0xff]
    %v129 = vld [vmem:[#allocation5 + $0x128] sm:$0xff]
    %v130 = vld [vmem:[#allocation5 + $0x130] sm:$0xff]
    %v131 = vld [vmem:[#allocation5 + $0x138] sm:$0xff]
    %v132 = vld [vmem:[#allocation5 + $0x140] sm:$0xff]
    %v133 = vld [vmem:[#allocation5 + $0x148] sm:$0xff]
    %v134 = vld [vmem:[#allocation5 + $0x150] sm:$0xff]
    %v135 = vld [vmem:[#allocation5 + $0x158] sm:$0xff]
    %v136 = vld [vmem:[#allocation5 + $0x160] sm:$0xff]
    %v137 = vld [vmem:[#allocation5 + $0x168] sm:$0xff]
    %v138 = vld [vmem:[#allocation5 + $0x170] sm:$0xff]
    %v139 = vld [vmem:[#allocation5 + $0x178] sm:$0xff]
    %v140 = vpack.c.bf16 %v95, %v92
    %v141 = vpack.c.bf16 %v96, %v93
    %v142 = vpack.c.bf16 %v97, %v94
    %v143 = vpack.c.bf16 %v101, %v98
    %v144 = vpack.c.bf16 %v102, %v99
    %v145 = vpack.c.bf16 %v103, %v100
    %v146 = vpack.c.bf16 %v107, %v104
    %v147 = vpack.c.bf16 %v108, %v105
    %v148 = vpack.c.bf16 %v109, %v106
    %v149 = vpack.c.bf16 %v113, %v110
    %v150 = vpack.c.bf16 %v114, %v111
    %v151 = vpack.c.bf16 %v115, %v112
    %v152 = vpack.c.bf16 %v119, %v116
    %v153 = vpack.c.bf16 %v120, %v117
    %v154 = vpack.c.bf16 %v121, %v118
    %v155 = vpack.c.bf16 %v125, %v122
    %v156 = vpack.c.bf16 %v126, %v123
    %v157 = vpack.c.bf16 %v127, %v124
    %v158 = vpack.c.bf16 %v131, %v128
    %v159 = vpack.c.bf16 %v132, %v129
    %v160 = vpack.c.bf16 %v133, %v130
    %v161 = vpack.c.bf16 %v137, %v134
    %v162 = vpack.c.bf16 %v138, %v135
    %v163 = vpack.c.bf16 %v139, %v136
    %v164 = vld [vmem:[%s2] sm:$0x7]
    %v166 = vlaneseq
    %v167 = vshrl.u32 %v166, 7
    %v168 = vsub.s32 0, %v167
    %v169 = vrot.slane %v164, %v168
    %v170 = vlaneseq
    %v171 = vshrl.u32 %v170, 7
    %v172 = vsub.s32 1, %v171
    %v173 = vrot.slane %v164, %v172
    %v174 = vlaneseq
    %v175 = vshrl.u32 %v174, 7
    %v176 = vsub.s32 2, %v175
    %v177 = vrot.slane %v164, %v176
    %181 = vmatprep.subr.bf16.mxu0 %v141
    %182 = vmatpush1.bf16.msra.mxu0 %v140
    %183 = vmatprep.subr.bf16.mxu0 %v144
    %184 = vmatpush1.bf16.msra.mxu0 %v143
    %185 = vmatprep.subr.bf16.mxu0 %v147
    %186 = vmatpush1.bf16.msra.mxu0 %v146
    %187 = vmatprep.subr.bf16.mxu0 %v150
    %188 = vmatpush1.bf16.msra.mxu0 %v149
    %189 = vmatprep.subr.bf16.mxu0 %v153
    %190 = vmatpush1.bf16.msra.mxu0 %v152
    %191 = vmatprep.subr.bf16.mxu0 %v156
    %192 = vmatpush1.bf16.msra.mxu0 %v155
    %193 = vmatprep.subr.bf16.mxu0 %v159
    %194 = vmatpush1.bf16.msra.mxu0 %v158
    %195 = vmatprep.subr.bf16.mxu0 %v162
    %196 = vmatpush1.bf16.msra.mxu0 %v161
    %197 = vmatprep.subr.bf16.mxu0 0
    %198 = vmatpush1.bf16.msra.mxu0 0
    %199 = vmatprep.subr.bf16.mxu0 0
    %200 = vmatpush1.bf16.msra.mxu0 0
    %201 = vmatprep.subr.bf16.mxu0 0
    %202 = vmatpush1.bf16.msra.mxu0 0
    %203 = vmatprep.subr.bf16.mxu0 0
    %204 = vmatpush1.bf16.msra.mxu0 0
    %205 = vmatprep.subr.bf16.mxu0 0
    %206 = vmatpush1.bf16.msra.mxu0 0
    %207 = vmatprep.subr.bf16.mxu0 0
    %208 = vmatpush1.bf16.msra.mxu0 0
    %209 = vmatprep.subr.bf16.mxu0 0
    %210 = vmatpush1.bf16.msra.mxu0 0
    %211 = vmatprep.subr.bf16.mxu0 0
    %212 = vmatpush1.bf16.msra.mxu0 0
    %213 = vmatprep.mubr.bf16.mxu0 0
    %214 = vmatmul.mubr.bf16.gmra.mrb[0].mxu0 %v76
    %v215 = vpop.f32.mrb[0].mxu0
    %v216 = vadd.f32 %v169, %v215
    %v217 = vpop.f32.mrb[0].mxu0
    %v218 = vadd.f32 %v173, %v217
    %v219 = vpop.f32.mrb[0].mxu0
    %v220 = vadd.f32 %v169, %v219
    %v221 = vpop.f32.mrb[0].mxu0
    %v222 = vadd.f32 %v173, %v221
    %223 = vmatprep.mubr.bf16.mxu0 0
    %224 = vmatmul.mubr.bf16.gmra.mrb[0].mxu0 %v77
    %v225 = vpop.f32.mrb[0].mxu0
    %v226 = vadd.f32 %v169, %v225
    %v227 = vpop.f32.mrb[0].mxu0
    %v228 = vadd.f32 %v173, %v227
    %v229 = vpop.f32.mrb[0].mxu0
    %v230 = vadd.f32 %v169, %v229
    %v231 = vpop.f32.mrb[0].mxu0
    %v232 = vadd.f32 %v173, %v231
    %233 = vmatprep.mubr.bf16.mxu0 0
    %234 = vmatmul.mubr.bf16.gmra.mrb[0].mxu0 %v78
    %v235 = vpop.f32.mrb[0].mxu0
    %v236 = vadd.f32 %v169, %v235
    %v237 = vpop.f32.mrb[0].mxu0
    %v238 = vadd.f32 %v173, %v237
    %v239 = vpop.f32.mrb[0].mxu0
    %v240 = vadd.f32 %v169, %v239
    %v241 = vpop.f32.mrb[0].mxu0
    %v242 = vadd.f32 %v173, %v241
    %243 = vmatprep.mubr.bf16.mxu0 0
    %244 = vmatmul.mubr.bf16.gmra.mrb[0].mxu0 %v79
    %v245 = vpop.f32.mrb[0].mxu0
    %v246 = vadd.f32 %v169, %v245
    %v247 = vpop.f32.mrb[0].mxu0
    %v248 = vadd.f32 %v173, %v247
    %v249 = vpop.f32.mrb[0].mxu0
    %v250 = vadd.f32 %v169, %v249
    %v251 = vpop.f32.mrb[0].mxu0
    %v252 = vadd.f32 %v173, %v251
    %253 = vmatprep.mubr.bf16.mxu0 0
    %254 = vmatmul.mubr.bf16.gmra.mrb[0].mxu0 %v80
    %v255 = vpop.f32.mrb[0].mxu0
    %v256 = vadd.f32 %v169, %v255
    %v257 = vpop.f32.mrb[0].mxu0
    %v258 = vadd.f32 %v173, %v257
    %v259 = vpop.f32.mrb[0].mxu0
    %v260 = vadd.f32 %v169, %v259
    %v261 = vpop.f32.mrb[0].mxu0
    %v262 = vadd.f32 %v173, %v261
    %263 = vmatprep.mubr.bf16.mxu0 0
    %264 = vmatmul.mubr.bf16.gmra.mrb[0].mxu0 %v81
    %v265 = vpop.f32.mrb[0].mxu0
    %v266 = vadd.f32 %v169, %v265
    %v267 = vpop.f32.mrb[0].mxu0
    %v268 = vadd.f32 %v173, %v267
    %v269 = vpop.f32.mrb[0].mxu0
    %v270 = vadd.f32 %v169, %v269
    %v271 = vpop.f32.mrb[0].mxu0
    %v272 = vadd.f32 %v173, %v271
    %273 = vmatprep.mubr.bf16.mxu0 0
    %274 = vmatmul.mubr.bf16.gmra.mrb[0].mxu0 %v82
    %v275 = vpop.f32.mrb[0].mxu0
    %v276 = vadd.f32 %v169, %v275
    %v277 = vpop.f32.mrb[0].mxu0
    %v278 = vadd.f32 %v173, %v277
    %v279 = vpop.f32.mrb[0].mxu0
    %v280 = vadd.f32 %v169, %v279
    %v281 = vpop.f32.mrb[0].mxu0
    %v282 = vadd.f32 %v173, %v281
    %283 = vmatprep.mubr.bf16.mxu0 0
    %284 = vmatmul.mubr.bf16.gmra.mrb[0].mxu0 %v83
    %v285 = vpop.f32.mrb[0].mxu0
    %v286 = vadd.f32 %v169, %v285
    %v287 = vpop.f32.mrb[0].mxu0
    %v288 = vadd.f32 %v173, %v287
    %v289 = vpop.f32.mrb[0].mxu0
    %v290 = vadd.f32 %v169, %v289
    %v291 = vpop.f32.mrb[0].mxu0
    %v292 = vadd.f32 %v173, %v291
    %293 = vmatprep.mubr.bf16.mxu0 0
    %294 = vmatmul.mubr.bf16.gmra.mrb[0].mxu0 %v84
    %v295 = vpop.f32.mrb[0].mxu0
    %v296 = vadd.f32 %v169, %v295
    %v297 = vpop.f32.mrb[0].mxu0
    %v298 = vadd.f32 %v173, %v297
    %v299 = vpop.f32.mrb[0].mxu0
    %v300 = vadd.f32 %v169, %v299
    %v301 = vpop.f32.mrb[0].mxu0
    %v302 = vadd.f32 %v173, %v301
    %303 = vmatprep.mubr.bf16.mxu0 0
    %304 = vmatmul.mubr.bf16.gmra.mrb[0].mxu0 %v85
    %v305 = vpop.f32.mrb[0].mxu0
    %v306 = vadd.f32 %v169, %v305
    %v307 = vpop.f32.mrb[0].mxu0
    %v308 = vadd.f32 %v173, %v307
    %v309 = vpop.f32.mrb[0].mxu0
    %v310 = vadd.f32 %v169, %v309
    %v311 = vpop.f32.mrb[0].mxu0
    %v312 = vadd.f32 %v173, %v311
    %313 = vmatprep.mubr.bf16.mxu0 0
    %314 = vmatmul.mubr.bf16.gmra.mrb[0].mxu0 %v86
    %v315 = vpop.f32.mrb[0].mxu0
    %v316 = vadd.f32 %v169, %v315
    %v317 = vpop.f32.mrb[0].mxu0
    %v318 = vadd.f32 %v173, %v317
    %v319 = vpop.f32.mrb[0].mxu0
    %v320 = vadd.f32 %v169, %v319
    %v321 = vpop.f32.mrb[0].mxu0
    %v322 = vadd.f32 %v173, %v321
    %323 = vmatprep.mubr.bf16.mxu0 0
    %324 = vmatmul.mubr.bf16.gmra.mrb[0].mxu0 %v87
    %v325 = vpop.f32.mrb[0].mxu0
    %v326 = vadd.f32 %v169, %v325
    %v327 = vpop.f32.mrb[0].mxu0
    %v328 = vadd.f32 %v173, %v327
    %v329 = vpop.f32.mrb[0].mxu0
    %v330 = vadd.f32 %v169, %v329
    %v331 = vpop.f32.mrb[0].mxu0
    %v332 = vadd.f32 %v173, %v331
    %333 = vmatprep.mubr.bf16.mxu0 0
    %334 = vmatmul.mubr.bf16.gmra.mrb[0].mxu0 %v88
    %v335 = vpop.f32.mrb[0].mxu0
    %v336 = vadd.f32 %v169, %v335
    %v337 = vpop.f32.mrb[0].mxu0
    %v338 = vadd.f32 %v173, %v337
    %v339 = vpop.f32.mrb[0].mxu0
    %v340 = vadd.f32 %v169, %v339
    %v341 = vpop.f32.mrb[0].mxu0
    %v342 = vadd.f32 %v173, %v341
    %343 = vmatprep.mubr.bf16.mxu0 0
    %344 = vmatmul.mubr.bf16.gmra.mrb[0].mxu0 %v89
    %v345 = vpop.f32.mrb[0].mxu0
    %v346 = vadd.f32 %v169, %v345
    %v347 = vpop.f32.mrb[0].mxu0
    %v348 = vadd.f32 %v173, %v347
    %v349 = vpop.f32.mrb[0].mxu0
    %v350 = vadd.f32 %v169, %v349
    %v351 = vpop.f32.mrb[0].mxu0
    %v352 = vadd.f32 %v173, %v351
    %353 = vmatprep.mubr.bf16.mxu0 0
    %354 = vmatmul.mubr.bf16.gmra.mrb[0].mxu0 %v90
    %v355 = vpop.f32.mrb[0].mxu0
    %v356 = vadd.f32 %v169, %v355
    %v357 = vpop.f32.mrb[0].mxu0
    %v358 = vadd.f32 %v173, %v357
    %v359 = vpop.f32.mrb[0].mxu0
    %v360 = vadd.f32 %v169, %v359
    %v361 = vpop.f32.mrb[0].mxu0
    %v362 = vadd.f32 %v173, %v361
    %363 = vmatprep.mubr.bf16.mxu0 0
    %364 = vmatmul.mubr.bf16.gmra.mrb[0].mxu0 %v91
    %v365 = vpop.f32.mrb[0].mxu0
    %v366 = vadd.f32 %v169, %v365
    %v367 = vpop.f32.mrb[0].mxu0
    %v368 = vadd.f32 %v173, %v367
    %v369 = vpop.f32.mrb[0].mxu0
    %v370 = vadd.f32 %v169, %v369
    %v371 = vpop.f32.mrb[0].mxu0
    %v372 = vadd.f32 %v173, %v371
    %373 = vdwg.mxu0
    %374 = vmatprep.subr.bf16.mxu0 0
    %375 = vmatpush1.bf16.msra.mxu0 %v142
    %376 = vmatprep.subr.bf16.mxu0 0
    %377 = vmatpush1.bf16.msra.mxu0 %v145
    %378 = vmatprep.subr.bf16.mxu0 0
    %379 = vmatpush1.bf16.msra.mxu0 %v148
    %380 = vmatprep.subr.bf16.mxu0 0
    %381 = vmatpush1.bf16.msra.mxu0 %v151
    %382 = vmatprep.subr.bf16.mxu0 0
    %383 = vmatpush1.bf16.msra.mxu0 %v154
    %384 = vmatprep.subr.bf16.mxu0 0
    %385 = vmatpush1.bf16.msra.mxu0 %v157
    %386 = vmatprep.subr.bf16.mxu0 0
    %387 = vmatpush1.bf16.msra.mxu0 %v160
    %388 = vmatprep.subr.bf16.mxu0 0
    %389 = vmatpush1.bf16.msra.mxu0 %v163
    %390 = vmatprep.subr.bf16.mxu0 0
    %391 = vmatpush1.bf16.msra.mxu0 0
    %392 = vmatprep.subr.bf16.mxu0 0
    %393 = vmatpush1.bf16.msra.mxu0 0
    %394 = vmatprep.subr.bf16.mxu0 0
    %395 = vmatpush1.bf16.msra.mxu0 0
    %396 = vmatprep.subr.bf16.mxu0 0
    %397 = vmatpush1.bf16.msra.mxu0 0
    %398 = vmatprep.subr.bf16.mxu0 0
    %399 = vmatpush1.bf16.msra.mxu0 0
    %400 = vmatprep.subr.bf16.mxu0 0
    %401 = vmatpush1.bf16.msra.mxu0 0
    %402 = vmatprep.subr.bf16.mxu0 0
    %403 = vmatpush1.bf16.msra.mxu0 0
    %404 = vmatprep.subr.bf16.mxu0 0
    %405 = vmatpush1.bf16.msra.mxu0 0
    %406 = vmatprep.mubr.bf16.mxu0 0
    %407 = vmatmul.mubr.bf16.gmra.mrb[0].mxu0 %v76
    %v408 = vpop.f32.mrb[0].mxu0
    %v409 = vadd.f32 %v177, %v408
    %v410 = vpop.f32.mrb[0].mxu0
    %v411 = vpop.f32.mrb[0].mxu0
    %v412 = vadd.f32 %v177, %v411
    %v413 = vpop.f32.mrb[0].mxu0
    %414 = vmatprep.mubr.bf16.mxu0 0
    %415 = vmatmul.mubr.bf16.gmra.mrb[0].mxu0 %v77
    %v416 = vpop.f32.mrb[0].mxu0
    %v417 = vadd.f32 %v177, %v416
    %v418 = vpop.f32.mrb[0].mxu0
    %v419 = vpop.f32.mrb[0].mxu0
    %v420 = vadd.f32 %v177, %v419
    %v421 = vpop.f32.mrb[0].mxu0
    %422 = vmatprep.mubr.bf16.mxu0 0
    %423 = vmatmul.mubr.bf16.gmra.mrb[0].mxu0 %v78
    %v424 = vpop.f32.mrb[0].mxu0
    %v425 = vadd.f32 %v177, %v424
    %v426 = vpop.f32.mrb[0].mxu0
    %v427 = vpop.f32.mrb[0].mxu0
    %v428 = vadd.f32 %v177, %v427
    %v429 = vpop.f32.mrb[0].mxu0
    %430 = vmatprep.mubr.bf16.mxu0 0
    %431 = vmatmul.mubr.bf16.gmra.mrb[0].mxu0 %v79
    %v432 = vpop.f32.mrb[0].mxu0
    %v433 = vadd.f32 %v177, %v432
    %v434 = vpop.f32.mrb[0].mxu0
    %v435 = vpop.f32.mrb[0].mxu0
    %v436 = vadd.f32 %v177, %v435
    %v437 = vpop.f32.mrb[0].mxu0
    %438 = vmatprep.mubr.bf16.mxu0 0
    %439 = vmatmul.mubr.bf16.gmra.mrb[0].mxu0 %v80
    %v440 = vpop.f32.mrb[0].mxu0
    %v441 = vadd.f32 %v177, %v440
    %v442 = vpop.f32.mrb[0].mxu0
    %v443 = vpop.f32.mrb[0].mxu0
    %v444 = vadd.f32 %v177, %v443
    %v445 = vpop.f32.mrb[0].mxu0
    %446 = vmatprep.mubr.bf16.mxu0 0
    %447 = vmatmul.mubr.bf16.gmra.mrb[0].mxu0 %v81
    %v448 = vpop.f32.mrb[0].mxu0
    %v449 = vadd.f32 %v177, %v448
    %v450 = vpop.f32.mrb[0].mxu0
    %v451 = vpop.f32.mrb[0].mxu0
    %v452 = vadd.f32 %v177, %v451
    %v453 = vpop.f32.mrb[0].mxu0
    %454 = vmatprep.mubr.bf16.mxu0 0
    %455 = vmatmul.mubr.bf16.gmra.mrb[0].mxu0 %v82
    %v456 = vpop.f32.mrb[0].mxu0
    %v457 = vadd.f32 %v177, %v456
    %v458 = vpop.f32.mrb[0].mxu0
    %v459 = vpop.f32.mrb[0].mxu0
    %v460 = vadd.f32 %v177, %v459
    %v461 = vpop.f32.mrb[0].mxu0
    %462 = vmatprep.mubr.bf16.mxu0 0
    %463 = vmatmul.mubr.bf16.gmra.mrb[0].mxu0 %v83
    %v464 = vpop.f32.mrb[0].mxu0
    %v465 = vadd.f32 %v177, %v464
    %v466 = vpop.f32.mrb[0].mxu0
    %v467 = vpop.f32.mrb[0].mxu0
    %v468 = vadd.f32 %v177, %v467
    %v469 = vpop.f32.mrb[0].mxu0
    %470 = vmatprep.mubr.bf16.mxu0 0
    %471 = vmatmul.mubr.bf16.gmra.mrb[0].mxu0 %v84
    %v472 = vpop.f32.mrb[0].mxu0
    %v473 = vadd.f32 %v177, %v472
    %v474 = vpop.f32.mrb[0].mxu0
    %v475 = vpop.f32.mrb[0].mxu0
    %v476 = vadd.f32 %v177, %v475
    %v477 = vpop.f32.mrb[0].mxu0
    %478 = vmatprep.mubr.bf16.mxu0 0
    %479 = vmatmul.mubr.bf16.gmra.mrb[0].mxu0 %v85
    %v480 = vpop.f32.mrb[0].mxu0
    %v481 = vadd.f32 %v177, %v480
    %v482 = vpop.f32.mrb[0].mxu0
    %v483 = vpop.f32.mrb[0].mxu0
    %v484 = vadd.f32 %v177, %v483
    %v485 = vpop.f32.mrb[0].mxu0
    %486 = vmatprep.mubr.bf16.mxu0 0
    %487 = vmatmul.mubr.bf16.gmra.mrb[0].mxu0 %v86
    %v488 = vpop.f32.mrb[0].mxu0
    %v489 = vadd.f32 %v177, %v488
    %v490 = vpop.f32.mrb[0].mxu0
    %v491 = vpop.f32.mrb[0].mxu0
    %v492 = vadd.f32 %v177, %v491
    %v493 = vpop.f32.mrb[0].mxu0
    %494 = vmatprep.mubr.bf16.mxu0 0
    %495 = vmatmul.mubr.bf16.gmra.mrb[0].mxu0 %v87
    %v496 = vpop.f32.mrb[0].mxu0
    %v497 = vadd.f32 %v177, %v496
    %v498 = vpop.f32.mrb[0].mxu0
    %v499 = vpop.f32.mrb[0].mxu0
    %v500 = vadd.f32 %v177, %v499
    %v501 = vpop.f32.mrb[0].mxu0
    %502 = vmatprep.mubr.bf16.mxu0 0
    %503 = vmatmul.mubr.bf16.gmra.mrb[0].mxu0 %v88
    %v504 = vpop.f32.mrb[0].mxu0
    %v505 = vadd.f32 %v177, %v504
    %v506 = vpop.f32.mrb[0].mxu0
    %v507 = vpop.f32.mrb[0].mxu0
    %v508 = vadd.f32 %v177, %v507
    %v509 = vpop.f32.mrb[0].mxu0
    %510 = vmatprep.mubr.bf16.mxu0 0
    %511 = vmatmul.mubr.bf16.gmra.mrb[0].mxu0 %v89
    %v512 = vpop.f32.mrb[0].mxu0
    %v513 = vadd.f32 %v177, %v512
    %v514 = vpop.f32.mrb[0].mxu0
    %v515 = vpop.f32.mrb[0].mxu0
    %v516 = vadd.f32 %v177, %v515
    %v517 = vpop.f32.mrb[0].mxu0
    %518 = vmatprep.mubr.bf16.mxu0 0
    %519 = vmatmul.mubr.bf16.gmra.mrb[0].mxu0 %v90
    %v520 = vpop.f32.mrb[0].mxu0
    %v521 = vadd.f32 %v177, %v520
    %v522 = vpop.f32.mrb[0].mxu0
    %v523 = vpop.f32.mrb[0].mxu0
    %v524 = vadd.f32 %v177, %v523
    %v525 = vpop.f32.mrb[0].mxu0
    %526 = vmatprep.mubr.bf16.mxu0 0
    %527 = vmatmul.mubr.bf16.gmra.mrb[0].mxu0 %v91
    %v528 = vpop.f32.mrb[0].mxu0
    %v529 = vadd.f32 %v177, %v528
    %v530 = vpop.f32.mrb[0].mxu0
    %v531 = vpop.f32.mrb[0].mxu0
    %v532 = vadd.f32 %v177, %v531
    %v533 = vpop.f32.mrb[0].mxu0
    %534 = vdwg.mxu0
    %535 = vst [vmem:[#allocation7] sm:$0xff] %v216
    %536 = vst [vmem:[#allocation7 + $0x8] sm:$0xff] %v218
    %537 = vst [vmem:[#allocation7 + $0x10] sm:$0xff] %v409
    %538 = vst [vmem:[#allocation7 + $0x18] sm:$0xff] %v220
    %539 = vst [vmem:[#allocation7 + $0x20] sm:$0xff] %v222
    %540 = vst [vmem:[#allocation7 + $0x28] sm:$0xff] %v412
    %541 = vst [vmem:[#allocation7 + $0x30] sm:$0xff] %v226
    %542 = vst [vmem:[#allocation7 + $0x38] sm:$0xff] %v228
    %543 = vst [vmem:[#allocation7 + $0x40] sm:$0xff] %v417
    %544 = vst [vmem:[#allocation7 + $0x48] sm:$0xff] %v230
    %545 = vst [vmem:[#allocation7 + $0x50] sm:$0xff] %v232
    %546 = vst [vmem:[#allocation7 + $0x58] sm:$0xff] %v420
    %547 = vst [vmem:[#allocation7 + $0x60] sm:$0xff] %v236
    %548 = vst [vmem:[#allocation7 + $0x68] sm:$0xff] %v238
    %549 = vst [vmem:[#allocation7 + $0x70] sm:$0xff] %v425
    %550 = vst [vmem:[#allocation7 + $0x78] sm:$0xff] %v240
    %551 = vst [vmem:[#allocation7 + $0x80] sm:$0xff] %v242
    %552 = vst [vmem:[#allocation7 + $0x88] sm:$0xff] %v428
    %553 = vst [vmem:[#allocation7 + $0x90] sm:$0xff] %v246
    %554 = vst [vmem:[#allocation7 + $0x98] sm:$0xff] %v248
    %555 = vst [vmem:[#allocation7 + $0xa0] sm:$0xff] %v433
    %556 = vst [vmem:[#allocation7 + $0xa8] sm:$0xff] %v250
    %557 = vst [vmem:[#allocation7 + $0xb0] sm:$0xff] %v252
    %558 = vst [vmem:[#allocation7 + $0xb8] sm:$0xff] %v436
    %559 = vst [vmem:[#allocation7 + $0xc0] sm:$0xff] %v256
    %560 = vst [vmem:[#allocation7 + $0xc8] sm:$0xff] %v258
    %561 = vst [vmem:[#allocation7 + $0xd0] sm:$0xff] %v441
    %562 = vst [vmem:[#allocation7 + $0xd8] sm:$0xff] %v260
    %563 = vst [vmem:[#allocation7 + $0xe0] sm:$0xff] %v262
    %564 = vst [vmem:[#allocation7 + $0xe8] sm:$0xff] %v444
    %565 = vst [vmem:[#allocation7 + $0xf0] sm:$0xff] %v266
    %566 = vst [vmem:[#allocation7 + $0xf8] sm:$0xff] %v268
    %567 = vst [vmem:[#allocation7 + $0x100] sm:$0xff] %v449
    %568 = vst [vmem:[#allocation7 + $0x108] sm:$0xff] %v270
    %569 = vst [vmem:[#allocation7 + $0x110] sm:$0xff] %v272
    %570 = vst [vmem:[#allocation7 + $0x118] sm:$0xff] %v452
    %571 = vst [vmem:[#allocation7 + $0x120] sm:$0xff] %v276
    %572 = vst [vmem:[#allocation7 + $0x128] sm:$0xff] %v278
    %573 = vst [vmem:[#allocation7 + $0x130] sm:$0xff] %v457
    %574 = vst [vmem:[#allocation7 + $0x138] sm:$0xff] %v280
    %575 = vst [vmem:[#allocation7 + $0x140] sm:$0xff] %v282
    %576 = vst [vmem:[#allocation7 + $0x148] sm:$0xff] %v460
    %577 = vst [vmem:[#allocation7 + $0x150] sm:$0xff] %v286
    %578 = vst [vmem:[#allocation7 + $0x158] sm:$0xff] %v288
    %579 = vst [vmem:[#allocation7 + $0x160] sm:$0xff] %v465
    %580 = vst [vmem:[#allocation7 + $0x168] sm:$0xff] %v290
    %581 = vst [vmem:[#allocation7 + $0x170] sm:$0xff] %v292
    %582 = vst [vmem:[#allocation7 + $0x178] sm:$0xff] %v468
    %583 = vst [vmem:[#allocation7 + $0x180] sm:$0xff] %v296
    %584 = vst [vmem:[#allocation7 + $0x188] sm:$0xff] %v298
    %585 = vst [vmem:[#allocation7 + $0x190] sm:$0xff] %v473
    %586 = vst [vmem:[#allocation7 + $0x198] sm:$0xff] %v300
    %587 = vst [vmem:[#allocation7 + $0x1a0] sm:$0xff] %v302
    %588 = vst [vmem:[#allocation7 + $0x1a8] sm:$0xff] %v476
    %589 = vst [vmem:[#allocation7 + $0x1b0] sm:$0xff] %v306
    %590 = vst [vmem:[#allocation7 + $0x1b8] sm:$0xff] %v308
    %591 = vst [vmem:[#allocation7 + $0x1c0] sm:$0xff] %v481
    %592 = vst [vmem:[#allocation7 + $0x1c8] sm:$0xff] %v310
    %593 = vst [vmem:[#allocation7 + $0x1d0] sm:$0xff] %v312
    %594 = vst [vmem:[#allocation7 + $0x1d8] sm:$0xff] %v484
    %595 = vst [vmem:[#allocation7 + $0x1e0] sm:$0xff] %v316
    %596 = vst [vmem:[#allocation7 + $0x1e8] sm:$0xff] %v318
    %597 = vst [vmem:[#allocation7 + $0x1f0] sm:$0xff] %v489
    %598 = vst [vmem:[#allocation7 + $0x1f8] sm:$0xff] %v320
    %599 = vst [vmem:[#allocation7 + $0x200] sm:$0xff] %v322
    %600 = vst [vmem:[#allocation7 + $0x208] sm:$0xff] %v492
    %601 = vst [vmem:[#allocation7 + $0x210] sm:$0xff] %v326
    %602 = vst [vmem:[#allocation7 + $0x218] sm:$0xff] %v328
    %603 = vst [vmem:[#allocation7 + $0x220] sm:$0xff] %v497
    %604 = vst [vmem:[#allocation7 + $0x228] sm:$0xff] %v330
    %605 = vst [vmem:[#allocation7 + $0x230] sm:$0xff] %v332
    %606 = vst [vmem:[#allocation7 + $0x238] sm:$0xff] %v500
    %607 = vst [vmem:[#allocation7 + $0x240] sm:$0xff] %v336
    %608 = vst [vmem:[#allocation7 + $0x248] sm:$0xff] %v338
    %609 = vst [vmem:[#allocation7 + $0x250] sm:$0xff] %v505
    %610 = vst [vmem:[#allocation7 + $0x258] sm:$0xff] %v340
    %611 = vst [vmem:[#allocation7 + $0x260] sm:$0xff] %v342
    %612 = vst [vmem:[#allocation7 + $0x268] sm:$0xff] %v508
    %613 = vst [vmem:[#allocation7 + $0x270] sm:$0xff] %v346
    %614 = vst [vmem:[#allocation7 + $0x278] sm:$0xff] %v348
    %615 = vst [vmem:[#allocation7 + $0x280] sm:$0xff] %v513
    %616 = vst [vmem:[#allocation7 + $0x288] sm:$0xff] %v350
    %617 = vst [vmem:[#allocation7 + $0x290] sm:$0xff] %v352
    %618 = vst [vmem:[#allocation7 + $0x298] sm:$0xff] %v516
    %619 = vst [vmem:[#allocation7 + $0x2a0] sm:$0xff] %v356
    %620 = vst [vmem:[#allocation7 + $0x2a8] sm:$0xff] %v358
    %621 = vst [vmem:[#allocation7 + $0x2b0] sm:$0xff] %v521
    %622 = vst [vmem:[#allocation7 + $0x2b8] sm:$0xff] %v360
    %623 = vst [vmem:[#allocation7 + $0x2c0] sm:$0xff] %v362
    %624 = vst [vmem:[#allocation7 + $0x2c8] sm:$0xff] %v524
    %625 = vst [vmem:[#allocation7 + $0x2d0] sm:$0xff] %v366
    %626 = vst [vmem:[#allocation7 + $0x2d8] sm:$0xff] %v368
    %627 = vst [vmem:[#allocation7 + $0x2e0] sm:$0xff] %v529
    %628 = vst [vmem:[#allocation7 + $0x2e8] sm:$0xff] %v370
    %629 = vst [vmem:[#allocation7 + $0x2f0] sm:$0xff] %v372
    %630 = vst [vmem:[#allocation7 + $0x2f8] sm:$0xff] %v532
    // Predicated region
    $region22: #{tpu_custom_call.1} parent=1 // pred_check
      _
    $region23: #{tpu_custom_call.1} parent=1 // pred_check_branch
      %632 = sbr.rel (0) target = $region25
    $region24: #{tpu_custom_call.1} parent=1 // pred_region
      %s634 = ssub.s32 12288, 12288
      %635 = vsyncadd [#allocation4], %s634
      %s636 = sshll.u32 [#allocation7], 4
      %s637 = int_to_ptr.vmem [resolvable:$true] %s636
      %642 = dma.vmem_to_hbm [thread:$0]  %s637, 12288, %s3, [#allocation4], 384, 384, 24
    $region25: #{tpu_custom_call.1} parent=1 // pred_fallthru
      _
    // Predicated region
    $region26: #{tpu_custom_call.1} parent=1 // pred_check
      _
    $region27: #{tpu_custom_call.1} parent=1 // pred_check_branch
      %644 = sbr.rel (0) target = $region29
    $region28: #{tpu_custom_call.1} parent=1 // pred_region
      %645 = dma.done [#allocation4], 12288
    $region29: #{tpu_custom_call.1} parent=1 // pred_fallthru
      _
    %646 = vsyncpa [#allocation3], 1
    %647 = vsyncpa [#allocation6], 1
    %648 = vsyncpa [#allocation4], 1

</llo_original>
